<compile_context>
chip_gen: v7x
topology: tpu7x:2x2x1
jax: 0.10.0
libtpu: 0.0.40
codegen_flags: <defaults>
</compile_context>

<pallas_src>
import functools

import jax
import jax.numpy as jnp
from jax.experimental import pallas as pl
from jax.experimental.pallas import tpu as pltpu

THRESH = 1.0


def _bn_kernel(x_ref, w_ref, b_ref, o_ref, *, inv_count, eps):
    # x_ref: (N, c_blk, HW)  -- full reduction extent for c_blk channels
    # w_ref: (1, c_blk, 1)   -- affine weight (gamma)
    # b_ref: (1, c_blk, 1)   -- affine bias (beta)
    # o_ref: (N, c_blk, HW)
    x = x_ref[...].astype(jnp.float32)

    # Per-channel sum / sum-of-squares over (N, HW): lane reduce, then
    # leading-axis reduce.
    s = jnp.sum(x, axis=2, keepdims=True)            # (N, c_blk, 1)
    s = jnp.sum(s, axis=0, keepdims=True)            # (1, c_blk, 1)
    s2 = jnp.sum(x * x, axis=2, keepdims=True)       # (N, c_blk, 1)
    s2 = jnp.sum(s2, axis=0, keepdims=True)          # (1, c_blk, 1)

    mean = s * inv_count                             # (1, c_blk, 1)
    var = s2 * inv_count - mean * mean               # biased variance (training BN)
    inv_std = jax.lax.rsqrt(var + eps)               # EUP rsqrt

    gamma = w_ref[...]                               # (1, c_blk, 1)
    beta = b_ref[...]                                # (1, c_blk, 1)

    # Fold affine + normalization into a single per-element FMA.
    scale = inv_std * gamma                          # (1, c_blk, 1)
    shift = beta - mean * scale                      # (1, c_blk, 1)
    o_ref[...] = (x * scale + shift).astype(o_ref.dtype)


def batch_norm_2d1(x, weight, bias, *, eps=1e-5):
    """x: (T, B, C, H, W) float -> (T, B, C, H, W) float32 (training-mode BN per channel C)."""
    t, b, c, h, w = x.shape
    n, hw = t * b, h * w

    # Free reshape (no transpose): the module's transposes cancel out.
    x2 = x.reshape(n, c, hw)

    # Sublane-full channel blocks when possible; fall back to full-C blocks.
    c_blk = 8 if (c % 8 == 0) else c
    grid = (c // c_blk,)

    w3 = weight.astype(jnp.float32).reshape(1, c, 1)
    b3 = bias.astype(jnp.float32).reshape(1, c, 1)

    kernel = functools.partial(
        _bn_kernel, inv_count=1.0 / float(n * hw), eps=float(eps))

    out = pl.pallas_call(
        kernel,
        out_shape=jax.ShapeDtypeStruct((n, c, hw), jnp.float32),
        grid_spec=pltpu.PrefetchScalarGridSpec(
            num_scalar_prefetch=0,
            grid=grid,
            in_specs=[
                pl.BlockSpec((n, c_blk, hw), lambda ci: (0, ci, 0)),
                pl.BlockSpec((1, c_blk, 1), lambda ci: (0, ci, 0)),
                pl.BlockSpec((1, c_blk, 1), lambda ci: (0, ci, 0)),
            ],
            out_specs=pl.BlockSpec((n, c_blk, hw), lambda ci: (0, ci, 0)),
        ),
        compiler_params=pltpu.CompilerParams(
            dimension_semantics=("parallel",)),
    )(x2, w3, b3)

    return out.reshape(t, b, c, h, w)


def batch_norm_2d1_ref(x, weight, bias, eps=1e-5):
    """Pure-JAX reference mirroring the PyTorch forward (training-mode BN)."""
    mean = jnp.mean(x, axis=(0, 1, 3, 4), keepdims=True)
    var = jnp.mean(jnp.square(x - mean), axis=(0, 1, 3, 4), keepdims=True)
    wg = weight.reshape(1, 1, -1, 1, 1)
    bt = bias.reshape(1, 1, -1, 1, 1)
    return (x - mean) / jnp.sqrt(var + eps) * wg + bt


if __name__ == "__main__":
    # Small shapes consistent with the module: (T, B, C, H, W), channel dim = 2.
    t, b, c, h, w = 2, 2, 16, 8, 8
    key = jax.random.PRNGKey(0)
    x = jax.random.normal(key, (t, b, c, h, w), dtype=jnp.float32)

    # BatchNorm3d2.reset_parameters: weight = 0.2 * thresh, bias = 0.
    weight = jnp.full((c,), 0.2 * THRESH, dtype=jnp.float32)
    bias = jnp.zeros((c,), dtype=jnp.float32)

    y = batch_norm_2d1(x, weight, bias)
    y = jax.block_until_ready(y)

    y_ref = batch_norm_2d1_ref(x, weight, bias)
    assert y.shape == x.shape
    assert jnp.allclose(y, y_ref, atol=1e-4, rtol=1e-4), "mismatch vs reference"

    print("KERNEL_OK")
</pallas_src>

<mosaic_0001>
module attributes {stable_mosaic.version = 11 : i64} {
  func.func @_bn_kernel(%arg0: i32, %arg1: memref<4x8x64xf32, #tpu.memory_space<vmem>>, %arg2: memref<1x8x1xf32, #tpu.memory_space<vmem>>, %arg3: memref<1x8x1xf32, #tpu.memory_space<vmem>>, %arg4: memref<4x8x64xf32, #tpu.memory_space<vmem>>) attributes {dimension_semantics = [#tpu.dimension_semantics<parallel>], iteration_bounds = array<i64: 2>, scalar_prefetch = 0 : i64, scratch_operands = 0 : i64, tpu.core_type = #tpu.core_type<tc>, window_params = [{transform_indices = @transform_0, window_bounds = array<i64: 4, 8, 64>}, {transform_indices = @transform_1, window_bounds = array<i64: 1, 8, 1>}, {transform_indices = @transform_2, window_bounds = array<i64: 1, 8, 1>}, {transform_indices = @transform_3, window_bounds = array<i64: 4, 8, 64>}]} {
    %c0 = arith.constant 0 : index
    %c0_0 = arith.constant 0 : index
    %c0_1 = arith.constant 0 : index
    %0 = vector.load %arg1[%c0, %c0_0, %c0_1] : memref<4x8x64xf32, #tpu.memory_space<vmem>>, vector<4x8x64xf32>
    %cst = arith.constant dense<0.000000e+00> : vector<4x8xf32>
    %1 = vector.multi_reduction <add>, %0, %cst [2] : vector<4x8x64xf32> to vector<4x8xf32>
    %2 = vector.shape_cast %1 : vector<4x8xf32> to vector<4x8x1xf32>
    %cst_2 = arith.constant dense<0.000000e+00> : vector<8x1xf32>
    %3 = vector.multi_reduction <add>, %2, %cst_2 [0] : vector<4x8x1xf32> to vector<8x1xf32>
    %4 = vector.shape_cast %3 : vector<8x1xf32> to vector<1x8x1xf32>
    %5 = arith.mulf %0, %0 : vector<4x8x64xf32>
    %cst_3 = arith.constant dense<0.000000e+00> : vector<4x8xf32>
    %6 = vector.multi_reduction <add>, %5, %cst_3 [2] : vector<4x8x64xf32> to vector<4x8xf32>
    %7 = vector.shape_cast %6 : vector<4x8xf32> to vector<4x8x1xf32>
    %cst_4 = arith.constant dense<0.000000e+00> : vector<8x1xf32>
    %8 = vector.multi_reduction <add>, %7, %cst_4 [0] : vector<4x8x1xf32> to vector<8x1xf32>
    %9 = vector.shape_cast %8 : vector<8x1xf32> to vector<1x8x1xf32>
    %cst_5 = arith.constant 3.906250e-03 : f32
    %10 = vector.broadcast %cst_5 : f32 to vector<1x8x1xf32>
    %11 = arith.mulf %4, %10 : vector<1x8x1xf32>
    %cst_6 = arith.constant 3.906250e-03 : f32
    %12 = vector.broadcast %cst_6 : f32 to vector<1x8x1xf32>
    %13 = arith.mulf %9, %12 : vector<1x8x1xf32>
    %14 = arith.mulf %11, %11 : vector<1x8x1xf32>
    %15 = arith.subf %13, %14 : vector<1x8x1xf32>
    %cst_7 = arith.constant 9.99999974E-6 : f32
    %16 = vector.broadcast %cst_7 : f32 to vector<1x8x1xf32>
    %17 = arith.addf %15, %16 : vector<1x8x1xf32>
    %18 = math.rsqrt %17 : vector<1x8x1xf32>
    %c0_8 = arith.constant 0 : index
    %c0_9 = arith.constant 0 : index
    %c0_10 = arith.constant 0 : index
    %19 = vector.load %arg2[%c0_8, %c0_9, %c0_10] : memref<1x8x1xf32, #tpu.memory_space<vmem>>, vector<1x8x1xf32>
    %c0_11 = arith.constant 0 : index
    %c0_12 = arith.constant 0 : index
    %c0_13 = arith.constant 0 : index
    %20 = vector.load %arg3[%c0_11, %c0_12, %c0_13] : memref<1x8x1xf32, #tpu.memory_space<vmem>>, vector<1x8x1xf32>
    %21 = arith.mulf %18, %19 : vector<1x8x1xf32>
    %22 = arith.mulf %11, %21 : vector<1x8x1xf32>
    %23 = arith.subf %20, %22 : vector<1x8x1xf32>
    %24 = vector.broadcast %21 : vector<1x8x1xf32> to vector<4x8x64xf32>
    %25 = arith.mulf %0, %24 : vector<4x8x64xf32>
    %26 = vector.broadcast %23 : vector<1x8x1xf32> to vector<4x8x64xf32>
    %27 = arith.addf %25, %26 : vector<4x8x64xf32>
    %c0_14 = arith.constant 0 : index
    %c0_15 = arith.constant 0 : index
    %c0_16 = arith.constant 0 : index
    %28 = vector.load %arg4[%c0_14, %c0_15, %c0_16] : memref<4x8x64xf32, #tpu.memory_space<vmem>>, vector<4x8x64xf32>
    tpu.vector_store %arg4[%c0_14, %c0_15, %c0_16], %27 {strides = array<i32>} : memref<4x8x64xf32, #tpu.memory_space<vmem>>, vector<4x8x64xf32>,
    return
  }
  func.func @transform_0(%arg0: i32) -> (i32, i32, i32) {
    %c0_i32 = arith.constant 0 : i32
    %c0_i32_0 = arith.constant 0 : i32
    %c0_i32_1 = arith.constant 0 : i32
    return %c0_i32, %arg0, %c0_i32_0 : i32, i32, i32
  }
  func.func @transform_1(%arg0: i32) -> (i32, i32, i32) {
    %c0_i32 = arith.constant 0 : i32
    %c0_i32_0 = arith.constant 0 : i32
    %c0_i32_1 = arith.constant 0 : i32
    return %c0_i32, %arg0, %c0_i32_0 : i32, i32, i32
  }
  func.func @transform_2(%arg0: i32) -> (i32, i32, i32) {
    %c0_i32 = arith.constant 0 : i32
    %c0_i32_0 = arith.constant 0 : i32
    %c0_i32_1 = arith.constant 0 : i32
    return %c0_i32, %arg0, %c0_i32_0 : i32, i32, i32
  }
  func.func @transform_3(%arg0: i32) -> (i32, i32, i32) {
    %c0_i32 = arith.constant 0 : i32
    %c0_i32_0 = arith.constant 0 : i32
    %c0_i32_1 = arith.constant 0 : i32
    return %c0_i32, %arg0, %c0_i32_0 : i32, i32, i32
  }
}

</mosaic_0001>

<llo_original>
// kernel: tpu_custom_call.1
$region0: #{tpu_custom_call.1}
  #allocation0 [shape = 'u32[]', space=smem, size = 0x4, offset = 0x4, fixed_abs, tag = 'smem constant byte address 0x4 - core index']
  #allocation1 [shape = 'u32[144,128]{1,0:T(1,128)}', space=vmem, size = 0x12000, scoped, tag = 'internal scratch']
  %s0 = inlined_call_operand.hbm [shape: f32[4,16,64], index: 0, kind: input, shape index: {}]
  %s1 = inlined_call_operand.vmem [shape: f32[1,16,1], index: 1, kind: input, shape index: {}]
  %s2 = inlined_call_operand.vmem [shape: f32[1,16,1], index: 2, kind: input, shape index: {}]
  %s3 = inlined_call_operand.hbm [shape: f32[4,16,64], index: 3, kind: output, shape index: {}]
  %s4 = sld [smem:[#allocation0]]
  $region49: #{tpu_custom_call.1} parent=0
    _
  %s6 = ssub.s32 1, %s4
  %s7 = scalar_select 0, %s6, %s4
  $region1: #{tpu_custom_call.1} parent=0
    #allocation2 [shape = 'u8[32768]{0}', space=vmem, size = 0x8000, scoped, tag = 'input window, operand 0']
    #allocation3 [shape = 's32[2]{0}', space=sflag, size = 0x8, scoped, tag = 'scoped memory for tpu_custom_call.1']
    #allocation4 [shape = 's32[2]{0}', space=sflag, size = 0x8, scoped, tag = 'scoped memory for tpu_custom_call.1']
    #allocation5 [shape = 'u8[32768]{0}', space=vmem, size = 0x8000, scoped, tag = 'output window, operand 0']
    %8 = vsyncpa [#allocation3], 0
    %s9 = scalar_lea.sflag [#allocation3], 1
    %10 = vsyncpa %s9, 0
    %11 = vsyncpa [#allocation4], 0
    %s12 = scalar_lea.sflag [#allocation4], 1
    %13 = vsyncpa %s12, 0
    loop: start=0, step=1, limit=4
    $region2: #{tpu_custom_call.1} parent=1 // loop_pre_header
      _
    $region3: #{tpu_custom_call.1} parent=1 // loop_header
      %s15 = sphi 0, %s19
      %p16 = scmp.ge.s32.totalorder %s15, 4
      %s25 = sphi 0, %s27
      %s28 = sphi 0, %s25
      %s29 = sphi 0, %s28
      %s45 = sphi 0, %s29
      %s51 = sphi 0, %s53
      %s54 = sphi 0, %s51
      %s55 = sphi 0, %s54
      %s71 = sphi 0, %s55
      %s77 = sphi 0, %s79
      %s80 = sphi 0, %s77
      %s81 = sphi 0, %s80
      %s97 = sphi 0, %s81
      %s103 = sphi 0, %s105
      %s106 = sphi 0, %s103
      %s107 = sphi 0, %s106
      %s123 = sphi 0, %s107
    $region4: #{tpu_custom_call.1} parent=1 // loop_header_branch
      %18 = sbr.rel (%p16) target = $region8
    $region5: #{tpu_custom_call.1} parent=1 // loop_body
      %s20 = ssub.s32 %s15, 1
      %s21 = ssub.s32 %s15, 2
      %s22 = sadd.s32 %s15, 1
      %s23 = ssub.s32 %s15, %s22
      %p24 = scmp.eq.s32.totalorder %s23, 0
      %s26 = sadd.s32 %s25, 1
      %s27 = scalar_select %p24, %s25, %s26
      %p30 = pneg %p24
      %p31 = scmp.eq.s32.totalorder %s15, 1
      %p32 = por %p30, %p31
      %p33 = scmp.ne.s32.totalorder %s25, %s28
      %p34 = scmp.eq.s32.totalorder %s15, 0
      %p35 = por %p33, %p34
      %p36 = scmp.ne.s32.totalorder %s25, %s28
      %p37 = scmp.eq.s32.totalorder %s20, 1
      %p38 = por %p36, %p37
      %p39 = scmp.ne.s32.totalorder %s28, %s29
      %p40 = scmp.eq.s32.totalorder %s20, 0
      %p41 = por %p39, %p40
      %p42 = scmp.ne.s32.totalorder %s28, %s29
      %p43 = scmp.eq.s32.totalorder %s21, 1
      %p44 = por %p42, %p43
      %p46 = scmp.ne.s32.totalorder %s29, %s45
      %p47 = scmp.eq.s32.totalorder %s21, 0
      %p48 = por %p46, %p47
      %s49 = ssub.s32 %s15, %s22
      %p50 = scmp.eq.s32.totalorder %s49, 0
      %s52 = sadd.s32 %s51, 1
      %s53 = scalar_select %p50, %s51, %s52
      %p56 = pneg %p50
      %p57 = scmp.eq.s32.totalorder %s15, 1
      %p58 = por %p56, %p57
      %p59 = scmp.ne.s32.totalorder %s51, %s54
      %p60 = scmp.eq.s32.totalorder %s15, 0
      %p61 = por %p59, %p60
      %p62 = scmp.ne.s32.totalorder %s51, %s54
      %p63 = scmp.eq.s32.totalorder %s20, 1
      %p64 = por %p62, %p63
      %p65 = scmp.ne.s32.totalorder %s54, %s55
      %p66 = scmp.eq.s32.totalorder %s20, 0
      %p67 = por %p65, %p66
      %p68 = scmp.ne.s32.totalorder %s54, %s55
      %p69 = scmp.eq.s32.totalorder %s21, 1
      %p70 = por %p68, %p69
      %p72 = scmp.ne.s32.totalorder %s55, %s71
      %p73 = scmp.eq.s32.totalorder %s21, 0
      %p74 = por %p72, %p73
      %s75 = ssub.s32 %s15, %s22
      %p76 = scmp.eq.s32.totalorder %s75, 0
      %s78 = sadd.s32 %s77, 1
      %s79 = scalar_select %p76, %s77, %s78
      %p82 = pneg %p76
      %p83 = scmp.eq.s32.totalorder %s15, 1
      %p84 = por %p82, %p83
      %p85 = scmp.ne.s32.totalorder %s77, %s80
      %p86 = scmp.eq.s32.totalorder %s15, 0
      %p87 = por %p85, %p86
      %p88 = scmp.ne.s32.totalorder %s77, %s80
      %p89 = scmp.eq.s32.totalorder %s20, 1
      %p90 = por %p88, %p89
      %p91 = scmp.ne.s32.totalorder %s80, %s81
      %p92 = scmp.eq.s32.totalorder %s20, 0
      %p93 = por %p91, %p92
      %p94 = scmp.ne.s32.totalorder %s80, %s81
      %p95 = scmp.eq.s32.totalorder %s21, 1
      %p96 = por %p94, %p95
      %p98 = scmp.ne.s32.totalorder %s81, %s97
      %p99 = scmp.eq.s32.totalorder %s21, 0
      %p100 = por %p98, %p99
      %s101 = ssub.s32 %s15, %s22
      %p102 = scmp.eq.s32.totalorder %s101, 0
      %s104 = sadd.s32 %s103, 1
      %s105 = scalar_select %p102, %s103, %s104
      %p108 = pneg %p102
      %p109 = scmp.eq.s32.totalorder %s15, 1
      %p110 = por %p108, %p109
      %p111 = scmp.ne.s32.totalorder %s103, %s106
      %p112 = scmp.eq.s32.totalorder %s15, 0
      %p113 = por %p111, %p112
      %p114 = scmp.ne.s32.totalorder %s103, %s106
      %p115 = scmp.eq.s32.totalorder %s20, 1
      %p116 = por %p114, %p115
      %p117 = scmp.ne.s32.totalorder %s106, %s107
      %p118 = scmp.eq.s32.totalorder %s20, 0
      %p119 = por %p117, %p118
      %p120 = scmp.ne.s32.totalorder %s106, %s107
      %p121 = scmp.eq.s32.totalorder %s21, 1
      %p122 = por %p120, %p121
      %p124 = scmp.ne.s32.totalorder %s107, %s123
      %p125 = scmp.eq.s32.totalorder %s21, 0
      %p126 = por %p124, %p125
      %p127 = scmp.le.s32.totalorder 1, %s15
      %p128 = scmp.lt.s32.totalorder %s15, 3
      %p129 = pnand %p127, %p128
      %p130 = pneg %p129
      // Predicated region
      $region9: #{tpu_custom_call.1} parent=5 // pred_check
        _
      $region10: #{tpu_custom_call.1} parent=5 // pred_check_branch
        %132 = sbr.rel (%p129) target = $region12
      $region11: #{tpu_custom_call.1} parent=5 // pred_region
        %s133 = ssub.s32 %s15, 1
      $region12: #{tpu_custom_call.1} parent=5 // pred_fallthru
        _
      %p134 = scmp.lt.s32.totalorder %s15, 2
      // Predicated region
      $region13: #{tpu_custom_call.1} parent=5 // pred_check
        %p135 = pneg %p134
      $region14: #{tpu_custom_call.1} parent=5 // pred_check_branch
        %137 = sbr.rel (%p135) target = $region16
      $region15: #{tpu_custom_call.1} parent=5 // pred_region
        // Predicated region
        $region17: #{tpu_custom_call.1} parent=15 // pred_check
          %p138 = pneg %p35
        $region18: #{tpu_custom_call.1} parent=15 // pred_check_branch
          %140 = sbr.rel (%p138) target = $region20
        $region19: #{tpu_custom_call.1} parent=15 // pred_region
          %s141 = sand.u32 %s25, 1
          %s142 = scalar_lea.sflag [#allocation3], %s141
          %s143 = sand.u32 %s25, 1
          %s144 = smul.addr %s143, 32
          %s145 = scalar_lea.vmem [#allocation2], %s144
          %s147 = ssub.s32 512, 512
          %148 = vsyncadd %s142, %s147
          %s149 = smul.addr %s15, 128
          %s150 = scalar_lea.hbm %s0, %s149
          %s151 = sshll.u32 %s145, 4
          %s152 = int_to_ptr.vmem [resolvable:$true] %s151
          %157 = dma.hbm_to_vmem [thread:$0]  %s150, 512, %s152, %s142, 256, 128, 8
        $region20: #{tpu_custom_call.1} parent=15 // pred_fallthru
          _
        // Predicated region
        $region21: #{tpu_custom_call.1} parent=15 // pred_check
          %p158 = pneg %p61
        $region22: #{tpu_custom_call.1} parent=15 // pred_check_branch
          %160 = sbr.rel (%p158) target = $region24
        $region23: #{tpu_custom_call.1} parent=15 // pred_region
          %p161 = scmp.lt.s32.totalorder %s15, 1
          %s162 = scalar_select %p161, %s15, 1
          %s163 = smul.addr %s162, 8
          %s164 = scalar_lea.vmem %s1, %s163
        $region24: #{tpu_custom_call.1} parent=15 // pred_fallthru
          _
        // Predicated region
        $region25: #{tpu_custom_call.1} parent=15 // pred_check
          %p165 = pneg %p87
        $region26: #{tpu_custom_call.1} parent=15 // pred_check_branch
          %167 = sbr.rel (%p165) target = $region28
        $region27: #{tpu_custom_call.1} parent=15 // pred_region
          %p168 = scmp.lt.s32.totalorder %s15, 1
          %s169 = scalar_select %p168, %s15, 1
          %s170 = smul.addr %s169, 8
          %s171 = scalar_lea.vmem %s2, %s170
        $region28: #{tpu_custom_call.1} parent=15 // pred_fallthru
          _
      $region16: #{tpu_custom_call.1} parent=5 // pred_fallthru
        _
      %p172 = scmp.le.s32.totalorder 1, %s15
      %p173 = scmp.lt.s32.totalorder %s15, 3
      %p174 = pnand %p172, %p173
      %p175 = pneg %p174
      // Predicated region
      $region29: #{tpu_custom_call.1} parent=5 // pred_check
        _
      $region30: #{tpu_custom_call.1} parent=5 // pred_check_branch
        %177 = sbr.rel (%p174) target = $region32
      $region31: #{tpu_custom_call.1} parent=5 // pred_region
        %s178 = ssub.s32 %s15, 1
        %s179 = sand.u32 %s28, 1
        %s180 = scalar_lea.sflag [#allocation3], %s179
        %s181 = sand.u32 %s28, 1
        %s182 = smul.addr %s181, 32
        %s183 = scalar_lea.vmem [#allocation2], %s182
        // Predicated region
        $region33: #{tpu_custom_call.1} parent=31 // pred_check
          %p184 = pneg %p41
        $region34: #{tpu_custom_call.1} parent=31 // pred_check_branch
          %186 = sbr.rel (%p184) target = $region36
        $region35: #{tpu_custom_call.1} parent=31 // pred_region
          %187 = dma.done %s180, 512
        $region36: #{tpu_custom_call.1} parent=31 // pred_fallthru
          _
        %s188 = sand.u32 %s28, 1
        %s189 = scalar_lea.sflag [#allocation3], %s188
        %s190 = sand.u32 %s28, 1
        %s191 = smul.addr %s190, 32
        %s192 = scalar_lea.vmem [#allocation2], %s191
        %p193 = pneg %p41
        %p194 = pneg %p38
        %p195 = scmp.lt.s32.totalorder %s20, 1
        %s196 = scalar_select %p195, %s20, 1
        %s197 = smul.addr %s196, 8
        %s198 = scalar_lea.vmem %s1, %s197
        %p199 = pneg %p67
        %p200 = pneg %p64
        %p201 = scmp.lt.s32.totalorder %s20, 1
        %s202 = scalar_select %p201, %s20, 1
        %s203 = smul.addr %s202, 8
        %s204 = scalar_lea.vmem %s2, %s203
        %p205 = pneg %p93
        %p206 = pneg %p90
        %p207 = pneg %p119
        %p208 = pneg %p116
        %s209 = sand.u32 %s106, 1
        %s210 = scalar_lea.sflag [#allocation4], %s209
        %s211 = sand.u32 %s106, 1
        %s212 = smul.addr %s211, 32
        %s213 = scalar_lea.vmem [#allocation5], %s212
        %p214 = scmp.lt.s32.totalorder %s20, 1
        %s215 = scalar_select %p214, %s20, 1
        %s216 = smul.addr %s215, 8
        %s217 = scalar_lea.vmem %s1, %s216
        %p218 = scmp.lt.s32.totalorder %s20, 1
        %s219 = scalar_select %p218, %s20, 1
        %s220 = smul.addr %s219, 8
        %s221 = scalar_lea.vmem %s2, %s220
        %v222 = vld [vmem:[%s183] sm:$0xff]
        %v223 = vld [vmem:[%s183 + $0x8] sm:$0xff]
        %v224 = vld [vmem:[%s183 + $0x10] sm:$0xff]
        %v225 = vld [vmem:[%s183 + $0x18] sm:$0xff]
        %vm226 = vcmask 523264
        %v227 = vsel %vm226, %v222, 0.0
        %228 = vadd.xlane.f32.xlu0 %v227
        %v229 = vpop.xlane.xlu0 %228
        %v230 = vsel %vm226, %v223, 0.0
        %231 = vadd.xlane.f32.xlu0 %v230
        %v232 = vpop.xlane.xlu0 %231
        %v233 = vsel %vm226, %v224, 0.0
        %234 = vadd.xlane.f32.xlu0 %v233
        %v235 = vpop.xlane.xlu0 %234
        %v236 = vsel %vm226, %v225, 0.0
        %237 = vadd.xlane.f32.xlu0 %v236
        %v238 = vpop.xlane.xlu0 %237
        %v239 = vadd.f32 %v229, %v232
        %v240 = vadd.f32 %v239, %v235
        %v241 = vadd.f32 %v240, %v238
        %v242 = vmul.f32 %v222, %v222
        %v243 = vmul.f32 %v223, %v223
        %v244 = vmul.f32 %v224, %v224
        %v245 = vmul.f32 %v225, %v225
        %v246 = vsel %vm226, %v242, 0.0
        %247 = vadd.xlane.f32.xlu0 %v246
        %v248 = vpop.xlane.xlu0 %247
        %v249 = vsel %vm226, %v243, 0.0
        %250 = vadd.xlane.f32.xlu0 %v249
        %v251 = vpop.xlane.xlu0 %250
        %v252 = vsel %vm226, %v244, 0.0
        %253 = vadd.xlane.f32.xlu0 %v252
        %v254 = vpop.xlane.xlu0 %253
        %v255 = vsel %vm226, %v245, 0.0
        %256 = vadd.xlane.f32.xlu0 %v255
        %v257 = vpop.xlane.xlu0 %256
        %v258 = vadd.f32 %v248, %v251
        %v259 = vadd.f32 %v258, %v254
        %v260 = vadd.f32 %v259, %v257
        %v261 = vmul.f32 %v241, 0.00390625
        %v262 = vmul.f32 %v260, 0.00390625
        %v263 = vmul.f32 %v261, %v261
        %v264 = vsub.f32 %v262, %v263
        %v265 = vadd.f32 %v264, 1e-05
        %v266 = vrsqrt.pop %v265
        %v267 = vld [vmem:[%s217] sm:$0xff]
        %v268 = vld [vmem:[%s221] sm:$0xff]
        %v269 = vmul.f32 %v266, %v267
        %v270 = vmul.f32 %v261, %v269
        %v271 = vsub.f32 %v268, %v270
        %273 = vset.pattern.permute.xlu0 0
        %274 = vperm.xlu0 %273, %v269
        %v275 = vpop.permute.xlu0 %274
        %v277 = vmul.f32 %v222, %v275
        %v278 = vmul.f32 %v223, %v275
        %v279 = vmul.f32 %v224, %v275
        %v280 = vmul.f32 %v225, %v275
        %282 = vset.pattern.permute.xlu0 0
        %283 = vperm.xlu0 %282, %v271
        %v284 = vpop.permute.xlu0 %283
        %v286 = vadd.f32 %v277, %v284
        %v287 = vadd.f32 %v278, %v284
        %v288 = vadd.f32 %v279, %v284
        %v289 = vadd.f32 %v280, %v284
        %290 = vst.msk [vmem:[%s213] sm:$0xff] %vm226, %v286
        %291 = vst.msk [vmem:[%s213 + $0x8] sm:$0xff] %vm226, %v287
        %292 = vst.msk [vmem:[%s213 + $0x10] sm:$0xff] %vm226, %v288
        %293 = vst.msk [vmem:[%s213 + $0x18] sm:$0xff] %vm226, %v289
        %s294 = sand.u32 %s106, 1
        %s295 = scalar_lea.sflag [#allocation4], %s294
        %s296 = sand.u32 %s106, 1
        %s297 = smul.addr %s296, 32
        %s298 = scalar_lea.vmem [#allocation5], %s297
        // Predicated region
        $region37: #{tpu_custom_call.1} parent=31 // pred_check
          %p299 = pneg %p116
        $region38: #{tpu_custom_call.1} parent=31 // pred_check_branch
          %301 = sbr.rel (%p299) target = $region40
        $region39: #{tpu_custom_call.1} parent=31 // pred_region
          %s303 = ssub.s32 512, 512
          %304 = vsyncadd %s295, %s303
          %s305 = smul.addr %s20, 128
          %s306 = scalar_lea.hbm %s3, %s305
          %s307 = sshll.u32 %s298, 4
          %s308 = int_to_ptr.vmem [resolvable:$true] %s307
          %313 = dma.vmem_to_hbm [thread:$0]  %s308, 512, %s306, %s295, 128, 256, 8
        $region40: #{tpu_custom_call.1} parent=31 // pred_fallthru
          _
      $region32: #{tpu_custom_call.1} parent=5 // pred_fallthru
        _
      %p314 = scmp.le.s32.totalorder 2, %s15
      // Predicated region
      $region41: #{tpu_custom_call.1} parent=5 // pred_check
        %p315 = pneg %p314
      $region42: #{tpu_custom_call.1} parent=5 // pred_check_branch
        %317 = sbr.rel (%p315) target = $region44
      $region43: #{tpu_custom_call.1} parent=5 // pred_region
        %s318 = ssub.s32 %s15, 2
        // Predicated region
        $region45: #{tpu_custom_call.1} parent=43 // pred_check
          %p319 = pneg %p122
        $region46: #{tpu_custom_call.1} parent=43 // pred_check_branch
          %321 = sbr.rel (%p319) target = $region48
        $region47: #{tpu_custom_call.1} parent=43 // pred_region
          %s322 = sand.u32 %s107, 1
          %s323 = scalar_lea.sflag [#allocation4], %s322
          %s324 = sand.u32 %s107, 1
          %s325 = smul.addr %s324, 32
          %s326 = scalar_lea.vmem [#allocation5], %s325
          %327 = dma.done %s323, 512
        $region48: #{tpu_custom_call.1} parent=43 // pred_fallthru
          _
      $region44: #{tpu_custom_call.1} parent=5 // pred_fallthru
        _
    $region6: #{tpu_custom_call.1} parent=1 // loop_footer
      %s19 = sadd.s32 1, %s15
    $region7: #{tpu_custom_call.1} parent=1 // loop_footer_branch
      %14 = sbr.rel target = $region3
    $region8: #{tpu_custom_call.1} parent=1 // loop_exit
      _
    %328 = vsyncpa [#allocation3], 1
    %s329 = scalar_lea.sflag [#allocation3], 1
    %330 = vsyncpa %s329, 1
    %331 = vsyncpa [#allocation4], 1
    %s332 = scalar_lea.sflag [#allocation4], 1
    %333 = vsyncpa %s332, 1

</llo_original>
